<compile_context>
chip_gen: v7x
topology: tpu7x:2x2x1
jax: 0.10.0
libtpu: 0.0.40
codegen_flags: <defaults>
</compile_context>

<pallas_src>
import jax
import jax.numpy as jnp
from jax import lax
from jax.experimental import pallas as pl
from jax.experimental.pallas import tpu as pltpu


def _bshape_out_kernel(x_ref, w_ref, b_ref, o_ref):
    # x_ref: (B_tile, C_in, HW)   w_ref: (n_classes, C_in)
    # b_ref: (n_classes, 1)       o_ref: (B_tile, n_classes, HW)
    b_tile = x_ref.shape[0]
    n_classes = o_ref.shape[1]
    hw = o_ref.shape[2]

    w = w_ref[...]
    # Hoisted lane-broadcast of the bias: JAX does not CSE broadcast_in_dim, so
    # doing this inside the loop would re-emit it every iteration.
    bias = jnp.broadcast_to(b_ref[...], (n_classes, hw))

    def one(s):
        # (n_classes, C_in) @ (C_in, HW) -> (n_classes, HW); f32 accumulate on MXU.
        logits = jnp.dot(w, x_ref[s], preferred_element_type=jnp.float32) + bias
        o_ref[s] = jax.nn.sigmoid(logits).astype(o_ref.dtype)

    if b_tile <= 8:
        # Tiny block: fully static unroll (live ranges stay short -- each sample
        # stores immediately).
        for s in range(b_tile):
            one(s)
    else:
        def body(s, carry):
            one(s)
            return carry

        # Partial unroll: overlaps MXU push / EUP sigmoid / stores across
        # samples without blowing up code size or vreg pressure.
        lax.fori_loop(0, b_tile, body, 0, unroll=8)


def _pick_batch_tile(n, bytes_per_sample, target_block_bytes):
    """Largest batch tile whose input block stays under the byte budget."""
    cap = max(1, target_block_bytes // max(1, bytes_per_sample))
    return int(min(cap, n))


def bshape_rcnn_outputs_forward(x_nchw, weight, bias, *, block_bytes=8 << 20):
    """Pallas implementation of bshape_rcnn_outputs.forward (inference path).

    x_nchw: (N, C_in, H, W) float32
    weight: (n_classes, C_in)  (Conv2d 1x1 weight squeezed)
    bias:   (n_classes,)
    returns (N, n_classes, H, W) float32 (sigmoid probs).
    """
    N, C_in, H, W = x_nchw.shape
    n_classes = weight.shape[0]
    HW = H * W

    # Free, layout-preserving view: NCHW -> (N, C_in, H*W).
    x = x_nchw.reshape(N, C_in, HW)
    w = weight.astype(jnp.float32)                       # (n_classes, C_in)
    b2 = bias.reshape(n_classes, 1).astype(jnp.float32)  # lane-broadcast in kernel

    itemsize = jnp.dtype(x_nchw.dtype).itemsize
    bytes_per_sample = C_in * HW * itemsize
    b_tile = _pick_batch_tile(N, bytes_per_sample, block_bytes)

    # Explicit VMEM budget: double-buffered input + output blocks, resident
    # params, plus slack.  Never below the 32 MiB common default so small
    # blocks don't under-provision Mosaic's internal scratch; 8 MiB input
    # blocks keep the total well under v7x's 64 MiB physical VMEM.
    in_block = b_tile * C_in * HW * itemsize
    out_block = b_tile * n_classes * HW * itemsize
    param_bytes = (w.size + b2.size) * 4
    vmem_limit = max(32 << 20, 2 * (in_block + out_block) + param_bytes + (2 << 20))

    grid = (pl.cdiv(N, b_tile),)
    out = pl.pallas_call(
        _bshape_out_kernel,
        out_shape=jax.ShapeDtypeStruct((N, n_classes, HW), x_nchw.dtype),
        grid_spec=pl.GridSpec(
            grid=grid,
            in_specs=[
                pl.BlockSpec((b_tile, C_in, HW), lambda i: (i, 0, 0)),
                # Tiny params: whole-array resident in VMEM, no per-step blocking.
                pl.BlockSpec(memory_space=pltpu.MemorySpace.VMEM),
                pl.BlockSpec(memory_space=pltpu.MemorySpace.VMEM),
            ],
            # Partial tail block (N % b_tile != 0) is masked on writeback;
            # samples are independent so padded inputs never contaminate
            # valid outputs.
            out_specs=pl.BlockSpec((b_tile, n_classes, HW), lambda i: (i, 0, 0)),
        ),
        compiler_params=pltpu.CompilerParams(
            dimension_semantics=("parallel",),
            vmem_limit_bytes=int(vmem_limit),
        ),
    )(x, w, b2)

    # Free view back to NCHW.
    return out.reshape(N, n_classes, H, W)


if __name__ == "__main__":
    key = jax.random.PRNGKey(0)
    k_x, k_w = jax.random.split(key)

    # Small, module-consistent shapes.
    N, dim_in, Hs, Ws = 2, 32, 16, 16
    n_classes = 8  # cfg.MODEL.NUM_CLASSES with CLS_SPECIFIC_MASK=True

    x = jax.random.normal(k_x, (N, dim_in, Hs, Ws), dtype=jnp.float32)

    # Deterministic param init matching _init_weights:
    #   classify.weight ~ Normal(0, 0.001), classify.bias = 0
    weight = 0.001 * jax.random.normal(k_w, (n_classes, dim_in), dtype=jnp.float32)
    bias = jnp.zeros((n_classes,), dtype=jnp.float32)

    out = bshape_rcnn_outputs_forward(x, weight, bias)
    out = jax.block_until_ready(out)

    # Pure-JAX reference check (1x1 conv == per-pixel matmul, then sigmoid).
    ref = jax.nn.sigmoid(
        jnp.einsum("nchw,oc->nohw", x, weight) + bias[None, :, None, None])
    assert out.shape == (N, n_classes, Hs, Ws)
    assert jnp.allclose(out, ref, atol=1e-5), "mismatch vs reference"

    print("KERNEL_OK")
</pallas_src>

<mosaic_0001>
module attributes {stable_mosaic.version = 11 : i64} {
  func.func @_bshape_out_kernel(%arg0: i32, %arg1: memref<2x32x256xf32, #tpu.memory_space<vmem>>, %arg2: memref<8x32xf32, #tpu.memory_space<vmem>>, %arg3: memref<8x1xf32, #tpu.memory_space<vmem>>, %arg4: memref<2x8x256xf32, #tpu.memory_space<vmem>>) attributes {dimension_semantics = [#tpu.dimension_semantics<parallel>], iteration_bounds = array<i64: 1>, scalar_prefetch = 0 : i64, scratch_operands = 0 : i64, tpu.core_type = #tpu.core_type<tc>, window_params = [{transform_indices = @transform_0, window_bounds = array<i64: 2, 32, 256>}, {pipeline_mode = #tpu.pipeline_mode<synchronous>, transform_indices = @transform_1, window_bounds = array<i64: 8, 32>}, {pipeline_mode = #tpu.pipeline_mode<synchronous>, transform_indices = @transform_2, window_bounds = array<i64: 8, 1>}, {transform_indices = @transform_3, window_bounds = array<i64: 2, 8, 256>}]} {
    %c0 = arith.constant 0 : index
    %c0_0 = arith.constant 0 : index
    %0 = vector.load %arg2[%c0, %c0_0] : memref<8x32xf32, #tpu.memory_space<vmem>>, vector<8x32xf32>
    %c0_1 = arith.constant 0 : index
    %c0_2 = arith.constant 0 : index
    %1 = vector.load %arg3[%c0_1, %c0_2] : memref<8x1xf32, #tpu.memory_space<vmem>>, vector<8x1xf32>
    %2 = vector.shape_cast %1 : vector<8x1xf32> to vector<8x1xf32>
    %3 = vector.broadcast %2 : vector<8x1xf32> to vector<8x256xf32>
    %c0_3 = arith.constant 0 : index
    %c0_4 = arith.constant 0 : index
    %c0_5 = arith.constant 0 : index
    %4 = vector.load %arg1[%c0_3, %c0_4, %c0_5] : memref<2x32x256xf32, #tpu.memory_space<vmem>>, vector<1x32x256xf32>
    %5 = vector.shape_cast %4 : vector<1x32x256xf32> to vector<32x256xf32>
    %cst = arith.constant dense<0.000000e+00> : vector<8x256xf32>
    %6 = tpu.matmul %0, %5, %cst {dimension_numbers = #tpu.dot_dimension_numbers<[1], [0], [0], [1], [0, 0, 1, 1], [], []>} : vector<8x32xf32>, vector<32x256xf32>, vector<8x256xf32> -> vector<8x256xf32>
    %7 = arith.addf %6, %3 : vector<8x256xf32>
    %8 = arith.negf %7 : vector<8x256xf32>
    %9 = math.exp %8 : vector<8x256xf32>
    %cst_6 = arith.constant 1.000000e+00 : f32
    %10 = vector.broadcast %cst_6 : f32 to vector<8x256xf32>
    %11 = arith.addf %10, %9 : vector<8x256xf32>
    %12 = arith.divf %10, %11 : vector<8x256xf32>
    %c0_7 = arith.constant 0 : index
    %c0_8 = arith.constant 0 : index
    %c0_9 = arith.constant 0 : index
    %13 = vector.load %arg4[%c0_7, %c0_8, %c0_9] : memref<2x8x256xf32, #tpu.memory_space<vmem>>, vector<1x8x256xf32>
    %14 = vector.shape_cast %13 : vector<1x8x256xf32> to vector<8x256xf32>
    %15 = vector.shape_cast %12 : vector<8x256xf32> to vector<1x8x256xf32>
    tpu.vector_store %arg4[%c0_7, %c0_8, %c0_9], %15 {strides = array<i32>} : memref<2x8x256xf32, #tpu.memory_space<vmem>>, vector<1x8x256xf32>,
    %c1 = arith.constant 1 : index
    %c0_10 = arith.constant 0 : index
    %c0_11 = arith.constant 0 : index
    %16 = vector.load %arg1[%c1, %c0_10, %c0_11] : memref<2x32x256xf32, #tpu.memory_space<vmem>>, vector<1x32x256xf32>
    %17 = vector.shape_cast %16 : vector<1x32x256xf32> to vector<32x256xf32>
    %cst_12 = arith.constant dense<0.000000e+00> : vector<8x256xf32>
    %18 = tpu.matmul %0, %17, %cst_12 {dimension_numbers = #tpu.dot_dimension_numbers<[1], [0], [0], [1], [0, 0, 1, 1], [], []>} : vector<8x32xf32>, vector<32x256xf32>, vector<8x256xf32> -> vector<8x256xf32>
    %19 = arith.addf %18, %3 : vector<8x256xf32>
    %20 = arith.negf %19 : vector<8x256xf32>
    %21 = math.exp %20 : vector<8x256xf32>
    %cst_13 = arith.constant 1.000000e+00 : f32
    %22 = vector.broadcast %cst_13 : f32 to vector<8x256xf32>
    %23 = arith.addf %22, %21 : vector<8x256xf32>
    %24 = arith.divf %22, %23 : vector<8x256xf32>
    %c1_14 = arith.constant 1 : index
    %c0_15 = arith.constant 0 : index
    %c0_16 = arith.constant 0 : index
    %25 = vector.load %arg4[%c1_14, %c0_15, %c0_16] : memref<2x8x256xf32, #tpu.memory_space<vmem>>, vector<1x8x256xf32>
    %26 = vector.shape_cast %25 : vector<1x8x256xf32> to vector<8x256xf32>
    %27 = vector.shape_cast %24 : vector<8x256xf32> to vector<1x8x256xf32>
    tpu.vector_store %arg4[%c1_14, %c0_15, %c0_16], %27 {strides = array<i32>} : memref<2x8x256xf32, #tpu.memory_space<vmem>>, vector<1x8x256xf32>,
    return
  }
  func.func @transform_0(%arg0: i32) -> (i32, i32, i32) {
    %c0_i32 = arith.constant 0 : i32
    %c0_i32_0 = arith.constant 0 : i32
    %c0_i32_1 = arith.constant 0 : i32
    return %arg0, %c0_i32, %c0_i32_0 : i32, i32, i32
  }
  func.func @transform_1(%arg0: i32) -> (i32, i32) {
    %c0_i32 = arith.constant 0 : i32
    %c0_i32_0 = arith.constant 0 : i32
    %c0_i32_1 = arith.constant 0 : i32
    return %c0_i32, %c0_i32_0 : i32, i32
  }
  func.func @transform_2(%arg0: i32) -> (i32, i32) {
    %c0_i32 = arith.constant 0 : i32
    %c0_i32_0 = arith.constant 0 : i32
    %c0_i32_1 = arith.constant 0 : i32
    return %c0_i32, %c0_i32_0 : i32, i32
  }
  func.func @transform_3(%arg0: i32) -> (i32, i32, i32) {
    %c0_i32 = arith.constant 0 : i32
    %c0_i32_0 = arith.constant 0 : i32
    %c0_i32_1 = arith.constant 0 : i32
    return %arg0, %c0_i32, %c0_i32_0 : i32, i32, i32
  }
}

</mosaic_0001>

<llo_original>
// kernel: tpu_custom_call.1
$region0: #{tpu_custom_call.1}
  #allocation0 [shape = 'u32[]', space=smem, size = 0x4, offset = 0x4, fixed_abs, tag = 'smem constant byte address 0x4 - core index']
  #allocation1 [shape = 'u32[144,128]{1,0:T(1,128)}', space=vmem, size = 0x12000, scoped, tag = 'internal scratch']
  %s0 = inlined_call_operand.hbm [shape: f32[2,32,256], index: 0, kind: input, shape index: {}]
  %s1 = inlined_call_operand.vmem [shape: f32[8,32], index: 1, kind: input, shape index: {}]
  %s2 = inlined_call_operand.vmem [shape: f32[8,1], index: 2, kind: input, shape index: {}]
  %s3 = inlined_call_operand.hbm [shape: f32[2,8,256], index: 3, kind: output, shape index: {}]
  %s4 = sld [smem:[#allocation0]]
  $region26: #{tpu_custom_call.1} parent=0
    _
  %s6 = ssub.s32 1, %s4
  %s7 = scalar_select 0, %s6, %s4
  $region1: #{tpu_custom_call.1} parent=0
    #allocation2 [shape = 'u8[65536]{0}', space=vmem, size = 0x10000, scoped, tag = 'input window, operand 0, single buffered']
    #allocation3 [shape = 's32[1]{0}', space=sflag, size = 0x4, scoped, tag = 'scoped memory for tpu_custom_call.1']
    #allocation4 [shape = 's32[1]{0}', space=sflag, size = 0x4, scoped, tag = 'scoped memory for tpu_custom_call.1']
    #allocation5 [shape = 'u8[16384]{0}', space=vmem, size = 0x4000, scoped, tag = 'output window, operand 0, single buffered']
    %8 = vsyncpa [#allocation3], 0
    %9 = vsyncpa [#allocation4], 0
    // Predicated region
    $region2: #{tpu_custom_call.1} parent=1 // pred_check
      _
    $region3: #{tpu_custom_call.1} parent=1 // pred_check_branch
      %11 = sbr.rel (0) target = $region5
    $region4: #{tpu_custom_call.1} parent=1 // pred_region
      %s13 = ssub.s32 2048, 2048
      %14 = vsyncadd [#allocation3], %s13
      %s15 = sshll.u32 [#allocation2], 4
      %s16 = int_to_ptr.vmem [resolvable:$true] %s15
      %21 = dma.hbm_to_vmem [thread:$0]  %s0, 2048, %s16, [#allocation3], 256, 256, 16
    $region5: #{tpu_custom_call.1} parent=1 // pred_fallthru
      _
    // Predicated region
    $region6: #{tpu_custom_call.1} parent=1 // pred_check
      _
    $region7: #{tpu_custom_call.1} parent=1 // pred_check_branch
      %23 = sbr.rel (0) target = $region9
    $region8: #{tpu_custom_call.1} parent=1 // pred_region
      _
    $region9: #{tpu_custom_call.1} parent=1 // pred_fallthru
      _
    // Predicated region
    $region10: #{tpu_custom_call.1} parent=1 // pred_check
      _
    $region11: #{tpu_custom_call.1} parent=1 // pred_check_branch
      %25 = sbr.rel (0) target = $region13
    $region12: #{tpu_custom_call.1} parent=1 // pred_region
      _
    $region13: #{tpu_custom_call.1} parent=1 // pred_fallthru
      _
    // Predicated region
    $region14: #{tpu_custom_call.1} parent=1 // pred_check
      _
    $region15: #{tpu_custom_call.1} parent=1 // pred_check_branch
      %27 = sbr.rel (0) target = $region17
    $region16: #{tpu_custom_call.1} parent=1 // pred_region
      %28 = dma.done [#allocation3], 2048
    $region17: #{tpu_custom_call.1} parent=1 // pred_fallthru
      _
    %v29 = vld [vmem:[%s1] sm:$0xff]
    %v30 = vld [vmem:[%s2] sm:$0xff]
    %32 = vset.pattern.permute.xlu0 0
    %33 = vperm.xlu0 %32, %v30
    %v34 = vpop.permute.xlu0 %33
    %v36 = vld [vmem:[#allocation2] sm:$0xff]
    %v37 = vld [vmem:[#allocation2 + $0x8] sm:$0xff]
    %v38 = vld [vmem:[#allocation2 + $0x10] sm:$0xff]
    %v39 = vld [vmem:[#allocation2 + $0x18] sm:$0xff]
    %v40 = vld [vmem:[#allocation2 + $0x20] sm:$0xff]
    %v41 = vld [vmem:[#allocation2 + $0x28] sm:$0xff]
    %v42 = vld [vmem:[#allocation2 + $0x30] sm:$0xff]
    %v43 = vld [vmem:[#allocation2 + $0x38] sm:$0xff]
    %vm44 = vcmask 261120
    %v46 = vsel %vm44, %v29, 0
    %48 = vmatprep.subr.mxu0 %v37
    %49 = vmatpush1.msra.mxu0 %v36
    %50 = vmatprep.subr.mxu0 %v39
    %51 = vmatpush1.msra.mxu0 %v38
    %52 = vmatprep.subr.mxu0 %v41
    %53 = vmatpush1.msra.mxu0 %v40
    %54 = vmatprep.subr.mxu0 %v43
    %55 = vmatpush1.msra.mxu0 %v42
    %56 = vmatprep.subr.mxu0 0.0
    %57 = vmatpush1.msra.mxu0 0.0
    %58 = vmatprep.subr.mxu0 0.0
    %59 = vmatpush1.msra.mxu0 0.0
    %60 = vmatprep.subr.mxu0 0.0
    %61 = vmatpush1.msra.mxu0 0.0
    %62 = vmatprep.subr.mxu0 0.0
    %63 = vmatpush1.msra.mxu0 0.0
    %64 = vmatprep.subr.mxu0 0.0
    %65 = vmatpush1.msra.mxu0 0.0
    %66 = vmatprep.subr.mxu0 0.0
    %67 = vmatpush1.msra.mxu0 0.0
    %68 = vmatprep.subr.mxu0 0.0
    %69 = vmatpush1.msra.mxu0 0.0
    %70 = vmatprep.subr.mxu0 0.0
    %71 = vmatpush1.msra.mxu0 0.0
    %72 = vmatprep.subr.mxu0 0.0
    %73 = vmatpush1.msra.mxu0 0.0
    %74 = vmatprep.subr.mxu0 0.0
    %75 = vmatpush1.msra.mxu0 0.0
    %76 = vmatprep.subr.mxu0 0.0
    %77 = vmatpush1.msra.mxu0 0.0
    %78 = vmatprep.subr.mxu0 0.0
    %79 = vmatpush1.msra.mxu0 0.0
    %80 = vmatprep.subr.mxu0 0.0
    %81 = vmatpush1.msra.mxu0 0.0
    %82 = vmatprep.subr.mxu0 0.0
    %83 = vmatpush1.msra.mxu0 0.0
    %84 = vmatprep.subr.mxu0 0.0
    %85 = vmatpush1.msra.mxu0 0.0
    %86 = vmatprep.subr.mxu0 0.0
    %87 = vmatpush1.msra.mxu0 0.0
    %88 = vmatprep.subr.mxu0 0.0
    %89 = vmatpush1.msra.mxu0 0.0
    %90 = vmatprep.subr.mxu0 0.0
    %91 = vmatpush1.msra.mxu0 0.0
    %92 = vmatprep.subr.mxu0 0.0
    %93 = vmatpush1.msra.mxu0 0.0
    %94 = vmatprep.subr.mxu0 0.0
    %95 = vmatpush1.msra.mxu0 0.0
    %96 = vmatprep.subr.mxu0 0.0
    %97 = vmatpush1.msra.mxu0 0.0
    %98 = vmatprep.subr.mxu0 0.0
    %99 = vmatpush1.msra.mxu0 0.0
    %100 = vmatprep.subr.mxu0 0.0
    %101 = vmatpush1.msra.mxu0 0.0
    %102 = vmatprep.subr.mxu0 0.0
    %103 = vmatpush1.msra.mxu0 0.0
    %104 = vmatprep.subr.mxu0 0.0
    %105 = vmatpush1.msra.mxu0 0.0
    %106 = vmatprep.subr.mxu0 0.0
    %107 = vmatpush1.msra.mxu0 0.0
    %108 = vmatprep.subr.mxu0 0.0
    %109 = vmatpush1.msra.mxu0 0.0
    %110 = vmatprep.subr.mxu0 0.0
    %111 = vmatpush1.msra.mxu0 0.0
    %112 = vmatprep.mubr.f32.mxu0 0.0
    %113 = vmatmul.mubr.f32.gmra.mrb[0].mxu0 %v46
    %v114 = vpop.f32.mrb[0].mxu0
    %v115 = vadd.f32 %v34, %v114
    %v116 = vpop.f32.mrb[0].mxu0
    %v117 = vadd.f32 %v34, %v116
    %118 = vdwg.mxu0
    %v119 = vxor.u32 %v115, 2147483648
    %v120 = vxor.u32 %v117, 2147483648
    %v121 = vmul.f32 %v119, 1.442695
    %v122 = vpow.pop %v121
    %v123 = vmul.f32 %v120, 1.442695
    %v124 = vpow.pop %v123
    %v125 = vadd.f32 %v122, 1.0
    %v126 = vadd.f32 %v124, 1.0
    %v127 = vrcp.pop %v125
    %v128 = vmul.f32 1.0, %v127
    %v129 = vrcp.pop %v126
    %v130 = vmul.f32 1.0, %v129
    %131 = vst [vmem:[#allocation5] sm:$0xff] %v128
    %132 = vst [vmem:[#allocation5 + $0x8] sm:$0xff] %v130
    %s133 = scalar_lea.vmem [#allocation2], 64
    %v134 = vld [vmem:[%s133] sm:$0xff]
    %v135 = vld [vmem:[%s133 + $0x8] sm:$0xff]
    %v136 = vld [vmem:[%s133 + $0x10] sm:$0xff]
    %v137 = vld [vmem:[%s133 + $0x18] sm:$0xff]
    %v138 = vld [vmem:[%s133 + $0x20] sm:$0xff]
    %v139 = vld [vmem:[%s133 + $0x28] sm:$0xff]
    %v140 = vld [vmem:[%s133 + $0x30] sm:$0xff]
    %v141 = vld [vmem:[%s133 + $0x38] sm:$0xff]
    %142 = vmatprep.subr.mxu0 %v135
    %143 = vmatpush1.msra.mxu0 %v134
    %144 = vmatprep.subr.mxu0 %v137
    %145 = vmatpush1.msra.mxu0 %v136
    %146 = vmatprep.subr.mxu0 %v139
    %147 = vmatpush1.msra.mxu0 %v138
    %148 = vmatprep.subr.mxu0 %v141
    %149 = vmatpush1.msra.mxu0 %v140
    %150 = vmatprep.subr.mxu0 0.0
    %151 = vmatpush1.msra.mxu0 0.0
    %152 = vmatprep.subr.mxu0 0.0
    %153 = vmatpush1.msra.mxu0 0.0
    %154 = vmatprep.subr.mxu0 0.0
    %155 = vmatpush1.msra.mxu0 0.0
    %156 = vmatprep.subr.mxu0 0.0
    %157 = vmatpush1.msra.mxu0 0.0
    %158 = vmatprep.subr.mxu0 0.0
    %159 = vmatpush1.msra.mxu0 0.0
    %160 = vmatprep.subr.mxu0 0.0
    %161 = vmatpush1.msra.mxu0 0.0
    %162 = vmatprep.subr.mxu0 0.0
    %163 = vmatpush1.msra.mxu0 0.0
    %164 = vmatprep.subr.mxu0 0.0
    %165 = vmatpush1.msra.mxu0 0.0
    %166 = vmatprep.subr.mxu0 0.0
    %167 = vmatpush1.msra.mxu0 0.0
    %168 = vmatprep.subr.mxu0 0.0
    %169 = vmatpush1.msra.mxu0 0.0
    %170 = vmatprep.subr.mxu0 0.0
    %171 = vmatpush1.msra.mxu0 0.0
    %172 = vmatprep.subr.mxu0 0.0
    %173 = vmatpush1.msra.mxu0 0.0
    %174 = vmatprep.subr.mxu0 0.0
    %175 = vmatpush1.msra.mxu0 0.0
    %176 = vmatprep.subr.mxu0 0.0
    %177 = vmatpush1.msra.mxu0 0.0
    %178 = vmatprep.subr.mxu0 0.0
    %179 = vmatpush1.msra.mxu0 0.0
    %180 = vmatprep.subr.mxu0 0.0
    %181 = vmatpush1.msra.mxu0 0.0
    %182 = vmatprep.subr.mxu0 0.0
    %183 = vmatpush1.msra.mxu0 0.0
    %184 = vmatprep.subr.mxu0 0.0
    %185 = vmatpush1.msra.mxu0 0.0
    %186 = vmatprep.subr.mxu0 0.0
    %187 = vmatpush1.msra.mxu0 0.0
    %188 = vmatprep.subr.mxu0 0.0
    %189 = vmatpush1.msra.mxu0 0.0
    %190 = vmatprep.subr.mxu0 0.0
    %191 = vmatpush1.msra.mxu0 0.0
    %192 = vmatprep.subr.mxu0 0.0
    %193 = vmatpush1.msra.mxu0 0.0
    %194 = vmatprep.subr.mxu0 0.0
    %195 = vmatpush1.msra.mxu0 0.0
    %196 = vmatprep.subr.mxu0 0.0
    %197 = vmatpush1.msra.mxu0 0.0
    %198 = vmatprep.subr.mxu0 0.0
    %199 = vmatpush1.msra.mxu0 0.0
    %200 = vmatprep.subr.mxu0 0.0
    %201 = vmatpush1.msra.mxu0 0.0
    %202 = vmatprep.subr.mxu0 0.0
    %203 = vmatpush1.msra.mxu0 0.0
    %204 = vmatprep.subr.mxu0 0.0
    %205 = vmatpush1.msra.mxu0 0.0
    %206 = vmatprep.mubr.f32.mxu0 0.0
    %207 = vmatmul.mubr.f32.gmra.mrb[0].mxu0 %v46
    %v208 = vpop.f32.mrb[0].mxu0
    %v209 = vadd.f32 %v34, %v208
    %v210 = vpop.f32.mrb[0].mxu0
    %v211 = vadd.f32 %v34, %v210
    %212 = vdwg.mxu0
    %v213 = vxor.u32 %v209, 2147483648
    %v214 = vxor.u32 %v211, 2147483648
    %v215 = vmul.f32 %v213, 1.442695
    %v216 = vpow.pop %v215
    %v217 = vmul.f32 %v214, 1.442695
    %v218 = vpow.pop %v217
    %v219 = vadd.f32 %v216, 1.0
    %v220 = vadd.f32 %v218, 1.0
    %v221 = vrcp.pop %v219
    %v222 = vmul.f32 1.0, %v221
    %v223 = vrcp.pop %v220
    %v224 = vmul.f32 1.0, %v223
    %s225 = scalar_lea.vmem [#allocation5], 16
    %226 = vst [vmem:[%s225] sm:$0xff] %v222
    %227 = vst [vmem:[%s225 + $0x8] sm:$0xff] %v224
    // Predicated region
    $region18: #{tpu_custom_call.1} parent=1 // pred_check
      _
    $region19: #{tpu_custom_call.1} parent=1 // pred_check_branch
      %229 = sbr.rel (0) target = $region21
    $region20: #{tpu_custom_call.1} parent=1 // pred_region
      %s231 = ssub.s32 512, 512
      %232 = vsyncadd [#allocation4], %s231
      %s233 = sshll.u32 [#allocation5], 4
      %s234 = int_to_ptr.vmem [resolvable:$true] %s233
      %239 = dma.vmem_to_hbm [thread:$0]  %s234, 512, %s3, [#allocation4], 256, 256, 16
    $region21: #{tpu_custom_call.1} parent=1 // pred_fallthru
      _
    // Predicated region
    $region22: #{tpu_custom_call.1} parent=1 // pred_check
      _
    $region23: #{tpu_custom_call.1} parent=1 // pred_check_branch
      %241 = sbr.rel (0) target = $region25
    $region24: #{tpu_custom_call.1} parent=1 // pred_region
      %242 = dma.done [#allocation4], 512
    $region25: #{tpu_custom_call.1} parent=1 // pred_fallthru
      _
    %243 = vsyncpa [#allocation3], 1
    %244 = vsyncpa [#allocation4], 1

</llo_original>
